<compile_context>
chip_gen: v5e
topology: v5e:2x2
jax: 0.10.0
libtpu: 0.0.40
codegen_flags: <defaults>
</compile_context>

<pallas_src>
import functools

import jax
import jax.numpy as jnp
from jax import lax
from jax.experimental import pallas as pl
from jax.experimental.pallas import tpu as pltpu

C_OUT = 64     # Conv1d out_channels
KSIZE = 64     # Conv1d kernel_size
STRIDE = 7     # Conv1d stride
POOL = 3       # MaxPool1d kernel_size (stride 1)
EPS = 1e-5     # BatchNorm eps

A = -(-KSIZE // STRIDE)      # 10 groups of width 7 cover one conv window
K_PAD = A * STRIDE           # 70: zero-padded contraction dimension


def _round_up(v, m):
    return (v + m - 1) // m * m


def _conv_stats_kernel(xr_ref, w_ref, b_ref, y_ref, stats_ref, *, l_out):
    """Pass 1: conv as a bf16 MXU matmul + per-sample BN channel sums.

    xr_ref:   (1, M7, 7)  f32   reshaped input sample
    w_ref:    (K_PAD, C)  bf16  zero-padded conv weights
    b_ref:    (1, C)      f32   conv bias
    y_ref:    (1, C, LP)  f32   conv activations, channel-major (lane-dense L)
    stats_ref:(1, 2, C)   f32   per-sample [sum; sum-of-squares] per channel
    """
    xr = xr_ref[0]                                    # (M7, 7)
    lp = y_ref.shape[2]                               # L_out padded to mult. of 8
    # In-kernel im2col: window offset a contributes lanes [7a, 7a+7).
    blocks = [xr[a:a + lp, :] for a in range(A)]      # A static sublane slices
    patches = jnp.concatenate(blocks, axis=1)         # (LP, 70) f32, VMEM only
    y = jnp.dot(patches.astype(jnp.bfloat16), w_ref[...],
                preferred_element_type=jnp.float32)   # bf16 MXU, f32 accumulate
    y = y + b_ref[...]                                # (1, C) broadcast
    # Channel statistics for the global training-mode BatchNorm; only the
    # first l_out (valid, un-padded) rows contribute.
    yv = y[:l_out, :]
    s = jnp.sum(yv, axis=0, keepdims=True)            # (1, C)
    ss = jnp.sum(yv * yv, axis=0, keepdims=True)      # (1, C)
    stats_ref[0] = jnp.concatenate([s, ss], axis=0)   # (2, C)
    # Store NCL (channel-major) so the length axis is the lane axis.
    y_ref[0] = y.T                                    # (C, LP)


def _bn_pool_kernel(y_ref, scale_ref, shift_ref, out_ref):
    """Pass 2: fused BN scale/shift + MaxPool1d(3, 1), NCL output.

    y_ref: (1, C, LP) f32; scale/shift: (C, 1) f32; out_ref: (1, C, L_pool) f32
    """
    z = y_ref[0] * scale_ref[...] + shift_ref[...]    # one mul + one add per elem
    l_pool = out_ref.shape[2]
    # Running max along the lane (length) axis: only one temporary stays live.
    p = z[:, 0:l_pool]
    p = jnp.maximum(p, z[:, 1:l_pool + 1])
    p = jnp.maximum(p, z[:, 2:l_pool + 2])
    out_ref[0] = p


def conv_block(x, w, b, gamma, beta):
    """x: (N, 1, L) f32; w: (C_OUT, 1, KSIZE) f32; b/gamma/beta: (C_OUT,) f32.

    Matches ConvBlock.forward() of a freshly constructed module, i.e.
    BatchNorm1d in training mode (batch statistics, biased variance, eps=1e-5).
    NOTE: this will not match PyTorch eval-mode inference with running stats.
    Returns (N, C_OUT, L_pool) f32 in PyTorch NCL layout.
    """
    n, cin, length = x.shape
    assert cin == 1
    assert length >= KSIZE, "input shorter than the conv kernel"
    l_out = (length - KSIZE) // STRIDE + 1
    assert l_out >= POOL, "conv output shorter than the pooling window"
    l_pool = l_out - (POOL - 1)

    lp = max(8, _round_up(l_out, 8))          # pad length axis for clean tiling
    m7 = lp + A - 1                           # rows of the (., 7) reshaped input
    l_need = STRIDE * m7                      # padded zeros only hit zero weights
    x2 = jnp.pad(x[:, 0, :], ((0, 0), (0, l_need - length)))
    x_r = x2.reshape(n, m7, STRIDE)           # pure reshape — no data expansion

    w_pad = jnp.pad(jnp.transpose(w[:, 0, :]), ((0, K_PAD - KSIZE), (0, 0)))
    w_pad = w_pad.astype(jnp.bfloat16)        # MXU-native operand dtype
    b_row = b.reshape(1, C_OUT).astype(jnp.float32)

    comp = pltpu.CompilerParams(
        dimension_semantics=("parallel",),    # shard samples across TCs (v7x)
        vmem_limit_bytes=48 * 1024 * 1024,    # headroom below v7x's 64 MiB
    )

    # ---- Pass 1: conv matmul + per-sample channel sums ----------------------
    y_cl, stats = pl.pallas_call(
        functools.partial(_conv_stats_kernel, l_out=l_out),
        grid=(n,),
        in_specs=[
            pl.BlockSpec((1, m7, STRIDE), lambda i: (i, 0, 0)),
            pl.BlockSpec((K_PAD, C_OUT), lambda i: (0, 0)),
            pl.BlockSpec((1, C_OUT), lambda i: (0, 0)),
        ],
        out_specs=[
            pl.BlockSpec((1, C_OUT, lp), lambda i: (i, 0, 0)),
            pl.BlockSpec((1, 2, C_OUT), lambda i: (i, 0, 0)),
        ],
        out_shape=[
            jax.ShapeDtypeStruct((n, C_OUT, lp), jnp.float32),
            jax.ShapeDtypeStruct((n, 2, C_OUT), jnp.float32),
        ],
        compiler_params=comp,
    )(x_r, w_pad, b_row)

    # Tiny parameter-sized glue (2 x 64 floats): fold the global batch
    # statistics into one fused scale/shift, as the review suggested.
    cnt = jnp.float32(n * l_out)
    tot = jnp.sum(stats, axis=0)                       # (2, C)
    mean = tot[0] / cnt
    var = tot[1] / cnt - mean * mean                   # biased variance
    scale_v = gamma * lax.rsqrt(var + EPS)
    shift_v = beta - mean * scale_v
    scale = scale_v.reshape(C_OUT, 1).astype(jnp.float32)
    shift = shift_v.reshape(C_OUT, 1).astype(jnp.float32)

    # ---- Pass 2: BN affine + maxpool, NCL output (no wrapper transpose) -----
    out = pl.pallas_call(
        _bn_pool_kernel,
        grid=(n,),
        in_specs=[
            pl.BlockSpec((1, C_OUT, lp), lambda i: (i, 0, 0)),
            pl.BlockSpec((C_OUT, 1), lambda i: (0, 0)),
            pl.BlockSpec((C_OUT, 1), lambda i: (0, 0)),
        ],
        out_specs=pl.BlockSpec((1, C_OUT, l_pool), lambda i: (i, 0, 0)),
        out_shape=jax.ShapeDtypeStruct((n, C_OUT, l_pool), jnp.float32),
        compiler_params=comp,
    )(y_cl, scale, shift)
    return out


def conv_block_ref(x, w, b, gamma, beta):
    """Pure-JAX reference.  Conv inputs are rounded to bf16 exactly like the
    kernel's MXU matmul (with f32 accumulation); BN/pool math stays in f32."""
    xq = x.astype(jnp.bfloat16).astype(jnp.float32)
    wq = w.astype(jnp.bfloat16).astype(jnp.float32)
    y = lax.conv_general_dilated(
        xq, wq, window_strides=(STRIDE,), padding="VALID",
        dimension_numbers=("NCH", "OIH", "NCH"))
    y = y + b[None, :, None]
    mean = jnp.mean(y, axis=(0, 2), keepdims=True)
    var = jnp.mean((y - mean) ** 2, axis=(0, 2), keepdims=True)
    y = (y - mean) * lax.rsqrt(var + EPS)
    y = y * gamma[None, :, None] + beta[None, :, None]
    return lax.reduce_window(y, -jnp.inf, lax.max,
                             (1, 1, POOL), (1, 1, 1), "VALID")


if __name__ == "__main__":
    key = jax.random.PRNGKey(0)
    kx, kw, kb = jax.random.split(key, 3)

    N, L = 2, 128                                  # conv out len = 10, pool = 8
    x = jax.random.normal(kx, (N, 1, L), dtype=jnp.float32)

    # PyTorch default Conv1d init: U(-1/sqrt(fan_in), 1/sqrt(fan_in)), fan_in=64
    bound = 1.0 / (KSIZE ** 0.5)
    w = jax.random.uniform(kw, (C_OUT, 1, KSIZE), jnp.float32, -bound, bound)
    b = jax.random.uniform(kb, (C_OUT,), jnp.float32, -bound, bound)
    gamma = jnp.ones((C_OUT,), jnp.float32)        # BatchNorm weight init
    beta = jnp.zeros((C_OUT,), jnp.float32)        # BatchNorm bias init

    out = jax.block_until_ready(conv_block(x, w, b, gamma, beta))
    ref = jax.block_until_ready(conv_block_ref(x, w, b, gamma, beta))

    assert out.shape == (N, C_OUT, (L - KSIZE) // STRIDE + 1 - (POOL - 1))
    # bf16 matmul inputs (f32 accumulate) -> compare against a bf16-rounded
    # reference; residual differences are accumulation-order level (~1e-6).
    assert jnp.allclose(out, ref, atol=1e-3, rtol=1e-3), float(
        jnp.max(jnp.abs(out - ref)))
    print("KERNEL_OK")
</pallas_src>

<mosaic_0001>
module attributes {stable_mosaic.version = 11 : i64} {
  func.func @_conv_stats_kernel(%arg0: i32, %arg1: memref<1x25x7xf32, #tpu.memory_space<vmem>>, %arg2: memref<70x64xbf16, #tpu.memory_space<vmem>>, %arg3: memref<1x64xf32, #tpu.memory_space<vmem>>, %arg4: memref<1x64x16xf32, #tpu.memory_space<vmem>>, %arg5: memref<1x2x64xf32, #tpu.memory_space<vmem>>) attributes {dimension_semantics = [#tpu.dimension_semantics<parallel>], iteration_bounds = array<i64: 2>, scalar_prefetch = 0 : i64, scratch_operands = 0 : i64, tpu.core_type = #tpu.core_type<tc>, window_params = [{transform_indices = @transform_0, window_bounds = array<i64: 1, 25, 7>}, {pipeline_mode = #tpu.pipeline_mode<synchronous>, transform_indices = @transform_1, window_bounds = array<i64: 70, 64>}, {pipeline_mode = #tpu.pipeline_mode<synchronous>, transform_indices = @transform_2, window_bounds = array<i64: 1, 64>}, {transform_indices = @transform_3, window_bounds = array<i64: 1, 64, 16>}, {transform_indices = @transform_4, window_bounds = array<i64: 1, 2, 64>}]} {
    %c0 = arith.constant 0 : index
    %c0_0 = arith.constant 0 : index
    %c0_1 = arith.constant 0 : index
    %0 = vector.load %arg1[%c0, %c0_0, %c0_1] : memref<1x25x7xf32, #tpu.memory_space<vmem>>, vector<1x25x7xf32>
    %1 = vector.shape_cast %0 : vector<1x25x7xf32> to vector<25x7xf32>
    %2 = vector.extract_strided_slice %1 {offsets = [0, 0], sizes = [16, 7], strides = [1, 1]} : vector<25x7xf32> to vector<16x7xf32>
    %3 = vector.extract_strided_slice %1 {offsets = [1, 0], sizes = [16, 7], strides = [1, 1]} : vector<25x7xf32> to vector<16x7xf32>
    %4 = vector.extract_strided_slice %1 {offsets = [2, 0], sizes = [16, 7], strides = [1, 1]} : vector<25x7xf32> to vector<16x7xf32>
    %5 = vector.extract_strided_slice %1 {offsets = [3, 0], sizes = [16, 7], strides = [1, 1]} : vector<25x7xf32> to vector<16x7xf32>
    %6 = vector.extract_strided_slice %1 {offsets = [4, 0], sizes = [16, 7], strides = [1, 1]} : vector<25x7xf32> to vector<16x7xf32>
    %7 = vector.extract_strided_slice %1 {offsets = [5, 0], sizes = [16, 7], strides = [1, 1]} : vector<25x7xf32> to vector<16x7xf32>
    %8 = vector.extract_strided_slice %1 {offsets = [6, 0], sizes = [16, 7], strides = [1, 1]} : vector<25x7xf32> to vector<16x7xf32>
    %9 = vector.extract_strided_slice %1 {offsets = [7, 0], sizes = [16, 7], strides = [1, 1]} : vector<25x7xf32> to vector<16x7xf32>
    %10 = vector.extract_strided_slice %1 {offsets = [8, 0], sizes = [16, 7], strides = [1, 1]} : vector<25x7xf32> to vector<16x7xf32>
    %11 = vector.extract_strided_slice %1 {offsets = [9, 0], sizes = [16, 7], strides = [1, 1]} : vector<25x7xf32> to vector<16x7xf32>
    %12 = tpu.concatenate %2, %3, %4, %5, %6, %7, %8, %9, %10, %11 in 1 : vector<16x7xf32>, vector<16x7xf32>, vector<16x7xf32>, vector<16x7xf32>, vector<16x7xf32>, vector<16x7xf32>, vector<16x7xf32>, vector<16x7xf32>, vector<16x7xf32>, vector<16x7xf32> -> vector<16x70xf32>
    %13 = arith.truncf %12 : vector<16x70xf32> to vector<16x70xbf16>
    %c0_2 = arith.constant 0 : index
    %c0_3 = arith.constant 0 : index
    %14 = vector.load %arg2[%c0_2, %c0_3] : memref<70x64xbf16, #tpu.memory_space<vmem>>, vector<70x64xbf16>
    %cst = arith.constant dense<0.000000e+00> : vector<16x64xf32>
    %15 = tpu.matmul %13, %14, %cst {dimension_numbers = #tpu.dot_dimension_numbers<[1], [0], [0], [1], [0, 0, 1, 1], [], []>} : vector<16x70xbf16>, vector<70x64xbf16>, vector<16x64xf32> -> vector<16x64xf32>
    %c0_4 = arith.constant 0 : index
    %c0_5 = arith.constant 0 : index
    %16 = vector.load %arg3[%c0_4, %c0_5] : memref<1x64xf32, #tpu.memory_space<vmem>>, vector<1x64xf32>
    %17 = vector.broadcast %16 : vector<1x64xf32> to vector<16x64xf32>
    %18 = arith.addf %15, %17 : vector<16x64xf32>
    %19 = vector.extract_strided_slice %18 {offsets = [0, 0], sizes = [10, 64], strides = [1, 1]} : vector<16x64xf32> to vector<10x64xf32>
    %cst_6 = arith.constant dense<0.000000e+00> : vector<64xf32>
    %20 = vector.multi_reduction <add>, %19, %cst_6 [0] : vector<10x64xf32> to vector<64xf32>
    %21 = vector.shape_cast %20 : vector<64xf32> to vector<1x64xf32>
    %22 = arith.mulf %19, %19 : vector<10x64xf32>
    %cst_7 = arith.constant dense<0.000000e+00> : vector<64xf32>
    %23 = vector.multi_reduction <add>, %22, %cst_7 [0] : vector<10x64xf32> to vector<64xf32>
    %24 = vector.shape_cast %23 : vector<64xf32> to vector<1x64xf32>
    %25 = tpu.concatenate %21, %24 in 0 : vector<1x64xf32>, vector<1x64xf32> -> vector<2x64xf32>
    %c0_8 = arith.constant 0 : index
    %c0_9 = arith.constant 0 : index
    %c0_10 = arith.constant 0 : index
    %26 = vector.load %arg5[%c0_8, %c0_9, %c0_10] : memref<1x2x64xf32, #tpu.memory_space<vmem>>, vector<1x2x64xf32>
    %27 = vector.shape_cast %26 : vector<1x2x64xf32> to vector<2x64xf32>
    %28 = vector.shape_cast %25 : vector<2x64xf32> to vector<1x2x64xf32>
    tpu.vector_store %arg5[%c0_8, %c0_9, %c0_10], %28 {strides = array<i32>} : memref<1x2x64xf32, #tpu.memory_space<vmem>>, vector<1x2x64xf32>,
    %29 = tpu.transpose %18, [1, 0] : vector<16x64xf32> -> vector<64x16xf32>
    %c0_11 = arith.constant 0 : index
    %c0_12 = arith.constant 0 : index
    %c0_13 = arith.constant 0 : index
    %30 = vector.load %arg4[%c0_11, %c0_12, %c0_13] : memref<1x64x16xf32, #tpu.memory_space<vmem>>, vector<1x64x16xf32>
    %31 = vector.shape_cast %30 : vector<1x64x16xf32> to vector<64x16xf32>
    %32 = vector.shape_cast %29 : vector<64x16xf32> to vector<1x64x16xf32>
    tpu.vector_store %arg4[%c0_11, %c0_12, %c0_13], %32 {strides = array<i32>} : memref<1x64x16xf32, #tpu.memory_space<vmem>>, vector<1x64x16xf32>,
    return
  }
  func.func @transform_0(%arg0: i32) -> (i32, i32, i32) {
    %c0_i32 = arith.constant 0 : i32
    %c0_i32_0 = arith.constant 0 : i32
    %c0_i32_1 = arith.constant 0 : i32
    return %arg0, %c0_i32, %c0_i32_0 : i32, i32, i32
  }
  func.func @transform_1(%arg0: i32) -> (i32, i32) {
    %c0_i32 = arith.constant 0 : i32
    %c0_i32_0 = arith.constant 0 : i32
    %c0_i32_1 = arith.constant 0 : i32
    return %c0_i32, %c0_i32_0 : i32, i32
  }
  func.func @transform_2(%arg0: i32) -> (i32, i32) {
    %c0_i32 = arith.constant 0 : i32
    %c0_i32_0 = arith.constant 0 : i32
    %c0_i32_1 = arith.constant 0 : i32
    return %c0_i32, %c0_i32_0 : i32, i32
  }
  func.func @transform_3(%arg0: i32) -> (i32, i32, i32) {
    %c0_i32 = arith.constant 0 : i32
    %c0_i32_0 = arith.constant 0 : i32
    %c0_i32_1 = arith.constant 0 : i32
    return %arg0, %c0_i32, %c0_i32_0 : i32, i32, i32
  }
  func.func @transform_4(%arg0: i32) -> (i32, i32, i32) {
    %c0_i32 = arith.constant 0 : i32
    %c0_i32_0 = arith.constant 0 : i32
    %c0_i32_1 = arith.constant 0 : i32
    return %arg0, %c0_i32, %c0_i32_0 : i32, i32, i32
  }
}

</mosaic_0001>

<llo_original>
// kernel: tpu_custom_call.1
$region0: #{tpu_custom_call.1}
  #allocation0 [shape = 'u32[]', space=smem, size = 0x4, offset = 0x4, fixed_abs, tag = 'smem constant byte address 0x4 - core index']
  #allocation1 [shape = 'u32[72,128]{1,0:T(1,128)}', space=vmem, size = 0x9000, scoped, tag = 'internal scratch']
  %s0 = inlined_call_operand.vmem [shape: f32[2,25,7], index: 0, kind: input, shape index: {}]
  %s1 = inlined_call_operand.vmem [shape: bf16[70,64], index: 1, kind: input, shape index: {}]
  %s2 = inlined_call_operand.vmem [shape: f32[1,64], index: 2, kind: input, shape index: {}]
  %s3 = inlined_call_operand.vmem [shape: f32[2,64,16], index: 3, kind: output, shape index: {0}]
  %s4 = inlined_call_operand.hbm [shape: f32[2,2,64], index: 4, kind: output, shape index: {1}]
  %5 = xla_tuple %s3, %s4
  %s6 = sld [smem:[#allocation0]]
  $region53: #{tpu_custom_call.1} parent=0
    _
  %s8 = ssub.s32 1, %s6
  %s9 = scalar_select 0, %s8, %s6
  $region1: #{tpu_custom_call.1} parent=0
    #allocation2 [shape = 'u8[2048]{0}', space=vmem, size = 0x800, scoped, tag = 'output window, operand 1']
    #allocation3 [shape = 's32[2]{0}', space=sflag, size = 0x8, scoped, tag = 'scoped memory for tpu_custom_call.1']
    %10 = vsyncpa [#allocation3], 0
    %s11 = scalar_lea.sflag [#allocation3], 1
    %12 = vsyncpa %s11, 0
    loop: start=0, step=1, limit=4
    $region2: #{tpu_custom_call.1} parent=1 // loop_pre_header
      _
    $region3: #{tpu_custom_call.1} parent=1 // loop_header
      %s14 = sphi 0, %s18
      %p15 = scmp.ge.s32.totalorder %s14, 4
      %s24 = sphi 0, %s26
      %s27 = sphi 0, %s24
      %s28 = sphi 0, %s27
      %s44 = sphi 0, %s28
      %s48 = sphi 0, %s48
      %s50 = sphi 0, %s48
      %s51 = sphi 0, %s50
      %s65 = sphi 0, %s51
      %s69 = sphi 0, %s69
      %s71 = sphi 0, %s69
      %s72 = sphi 0, %s71
      %s86 = sphi 0, %s72
      %s92 = sphi 0, %s94
      %s95 = sphi 0, %s92
      %s96 = sphi 0, %s95
      %s112 = sphi 0, %s96
      %s118 = sphi 0, %s120
      %s121 = sphi 0, %s118
      %s122 = sphi 0, %s121
      %s138 = sphi 0, %s122
    $region4: #{tpu_custom_call.1} parent=1 // loop_header_branch
      %17 = sbr.rel (%p15) target = $region8
    $region5: #{tpu_custom_call.1} parent=1 // loop_body
      %s19 = ssub.s32 %s14, 1
      %s20 = ssub.s32 %s14, 2
      %s21 = sadd.s32 %s14, 1
      %s22 = ssub.s32 %s14, %s21
      %p23 = scmp.eq.s32.totalorder %s22, 0
      %s25 = sadd.s32 %s24, 1
      %s26 = scalar_select %p23, %s24, %s25
      %p29 = pneg %p23
      %p30 = scmp.eq.s32.totalorder %s14, 1
      %p31 = por %p29, %p30
      %p32 = scmp.ne.s32.totalorder %s24, %s27
      %p33 = scmp.eq.s32.totalorder %s14, 0
      %p34 = por %p32, %p33
      %p35 = scmp.ne.s32.totalorder %s24, %s27
      %p36 = scmp.eq.s32.totalorder %s19, 1
      %p37 = por %p35, %p36
      %p38 = scmp.ne.s32.totalorder %s27, %s28
      %p39 = scmp.eq.s32.totalorder %s19, 0
      %p40 = por %p38, %p39
      %p41 = scmp.ne.s32.totalorder %s27, %s28
      %p42 = scmp.eq.s32.totalorder %s20, 1
      %p43 = por %p41, %p42
      %p45 = scmp.ne.s32.totalorder %s28, %s44
      %p46 = scmp.eq.s32.totalorder %s20, 0
      %p47 = por %p45, %p46
      %s49 = sadd.s32 %s48, 1
      %p52 = scmp.eq.s32.totalorder %s14, 1
      %p53 = scmp.ne.s32.totalorder %s48, %s50
      %p54 = scmp.eq.s32.totalorder %s14, 0
      %p55 = por %p53, %p54
      %p56 = scmp.ne.s32.totalorder %s48, %s50
      %p57 = scmp.eq.s32.totalorder %s19, 1
      %p58 = por %p56, %p57
      %p59 = scmp.ne.s32.totalorder %s50, %s51
      %p60 = scmp.eq.s32.totalorder %s19, 0
      %p61 = por %p59, %p60
      %p62 = scmp.ne.s32.totalorder %s50, %s51
      %p63 = scmp.eq.s32.totalorder %s20, 1
      %p64 = por %p62, %p63
      %p66 = scmp.ne.s32.totalorder %s51, %s65
      %p67 = scmp.eq.s32.totalorder %s20, 0
      %p68 = por %p66, %p67
      %s70 = sadd.s32 %s69, 1
      %p73 = scmp.eq.s32.totalorder %s14, 1
      %p74 = scmp.ne.s32.totalorder %s69, %s71
      %p75 = scmp.eq.s32.totalorder %s14, 0
      %p76 = por %p74, %p75
      %p77 = scmp.ne.s32.totalorder %s69, %s71
      %p78 = scmp.eq.s32.totalorder %s19, 1
      %p79 = por %p77, %p78
      %p80 = scmp.ne.s32.totalorder %s71, %s72
      %p81 = scmp.eq.s32.totalorder %s19, 0
      %p82 = por %p80, %p81
      %p83 = scmp.ne.s32.totalorder %s71, %s72
      %p84 = scmp.eq.s32.totalorder %s20, 1
      %p85 = por %p83, %p84
      %p87 = scmp.ne.s32.totalorder %s72, %s86
      %p88 = scmp.eq.s32.totalorder %s20, 0
      %p89 = por %p87, %p88
      %s90 = ssub.s32 %s14, %s21
      %p91 = scmp.eq.s32.totalorder %s90, 0
      %s93 = sadd.s32 %s92, 1
      %s94 = scalar_select %p91, %s92, %s93
      %p97 = pneg %p91
      %p98 = scmp.eq.s32.totalorder %s14, 1
      %p99 = por %p97, %p98
      %p100 = scmp.ne.s32.totalorder %s92, %s95
      %p101 = scmp.eq.s32.totalorder %s14, 0
      %p102 = por %p100, %p101
      %p103 = scmp.ne.s32.totalorder %s92, %s95
      %p104 = scmp.eq.s32.totalorder %s19, 1
      %p105 = por %p103, %p104
      %p106 = scmp.ne.s32.totalorder %s95, %s96
      %p107 = scmp.eq.s32.totalorder %s19, 0
      %p108 = por %p106, %p107
      %p109 = scmp.ne.s32.totalorder %s95, %s96
      %p110 = scmp.eq.s32.totalorder %s20, 1
      %p111 = por %p109, %p110
      %p113 = scmp.ne.s32.totalorder %s96, %s112
      %p114 = scmp.eq.s32.totalorder %s20, 0
      %p115 = por %p113, %p114
      %s116 = ssub.s32 %s14, %s21
      %p117 = scmp.eq.s32.totalorder %s116, 0
      %s119 = sadd.s32 %s118, 1
      %s120 = scalar_select %p117, %s118, %s119
      %p123 = pneg %p117
      %p124 = scmp.eq.s32.totalorder %s14, 1
      %p125 = por %p123, %p124
      %p126 = scmp.ne.s32.totalorder %s118, %s121
      %p127 = scmp.eq.s32.totalorder %s14, 0
      %p128 = por %p126, %p127
      %p129 = scmp.ne.s32.totalorder %s118, %s121
      %p130 = scmp.eq.s32.totalorder %s19, 1
      %p131 = por %p129, %p130
      %p132 = scmp.ne.s32.totalorder %s121, %s122
      %p133 = scmp.eq.s32.totalorder %s19, 0
      %p134 = por %p132, %p133
      %p135 = scmp.ne.s32.totalorder %s121, %s122
      %p136 = scmp.eq.s32.totalorder %s20, 1
      %p137 = por %p135, %p136
      %p139 = scmp.ne.s32.totalorder %s122, %s138
      %p140 = scmp.eq.s32.totalorder %s20, 0
      %p141 = por %p139, %p140
      %p142 = scmp.le.s32.totalorder 1, %s14
      %p143 = scmp.lt.s32.totalorder %s14, 3
      %p144 = pnand %p142, %p143
      %p145 = pneg %p144
      // Predicated region
      $region9: #{tpu_custom_call.1} parent=5 // pred_check
        _
      $region10: #{tpu_custom_call.1} parent=5 // pred_check_branch
        %147 = sbr.rel (%p144) target = $region12
      $region11: #{tpu_custom_call.1} parent=5 // pred_region
        %s148 = ssub.s32 %s14, 1
        // Predicated region
        $region13: #{tpu_custom_call.1} parent=11 // pred_check
          %p149 = pneg %p61
        $region14: #{tpu_custom_call.1} parent=11 // pred_check_branch
          %151 = sbr.rel (%p149) target = $region16
        $region15: #{tpu_custom_call.1} parent=11 // pred_region
          _
        $region16: #{tpu_custom_call.1} parent=11 // pred_fallthru
          _
        // Predicated region
        $region17: #{tpu_custom_call.1} parent=11 // pred_check
          %p152 = pneg %p82
        $region18: #{tpu_custom_call.1} parent=11 // pred_check_branch
          %154 = sbr.rel (%p152) target = $region20
        $region19: #{tpu_custom_call.1} parent=11 // pred_region
          _
        $region20: #{tpu_custom_call.1} parent=11 // pred_fallthru
          _
      $region12: #{tpu_custom_call.1} parent=5 // pred_fallthru
        _
      %p155 = scmp.lt.s32.totalorder %s14, 2
      // Predicated region
      $region21: #{tpu_custom_call.1} parent=5 // pred_check
        %p156 = pneg %p155
      $region22: #{tpu_custom_call.1} parent=5 // pred_check_branch
        %158 = sbr.rel (%p156) target = $region24
      $region23: #{tpu_custom_call.1} parent=5 // pred_region
        // Predicated region
        $region25: #{tpu_custom_call.1} parent=23 // pred_check
          %p159 = pneg %p34
        $region26: #{tpu_custom_call.1} parent=23 // pred_check_branch
          %161 = sbr.rel (%p159) target = $region28
        $region27: #{tpu_custom_call.1} parent=23 // pred_region
          %p162 = scmp.lt.s32.totalorder %s14, 1
          %s163 = scalar_select %p162, %s14, 1
          %s164 = smul.addr %s163, 4
          %s165 = smul.addr %s164, 8
          %s166 = scalar_lea.vmem %s0, %s165
        $region28: #{tpu_custom_call.1} parent=23 // pred_fallthru
          _
      $region24: #{tpu_custom_call.1} parent=5 // pred_fallthru
        _
      %p167 = scmp.le.s32.totalorder 1, %s14
      %p168 = scmp.lt.s32.totalorder %s14, 3
      %p169 = pnand %p167, %p168
      %p170 = pneg %p169
      // Predicated region
      $region29: #{tpu_custom_call.1} parent=5 // pred_check
        _
      $region30: #{tpu_custom_call.1} parent=5 // pred_check_branch
        %172 = sbr.rel (%p169) target = $region32
      $region31: #{tpu_custom_call.1} parent=5 // pred_region
        %s173 = ssub.s32 %s14, 1
        %p174 = scmp.lt.s32.totalorder %s19, 1
        %s175 = scalar_select %p174, %s19, 1
        %s176 = smul.addr %s175, 4
        %s177 = smul.addr %s176, 8
        %s178 = scalar_lea.vmem %s0, %s177
        %p179 = pneg %p40
        %p180 = pneg %p37
        %p181 = pneg %p61
        %p182 = pneg %p58
        %p183 = pneg %p82
        %p184 = pneg %p79
        %p185 = pneg %p108
        %p186 = pneg %p105
        %p187 = scmp.lt.s32.totalorder %s19, 1
        %s188 = scalar_select %p187, %s19, 1
        %s189 = smul.addr %s188, 8
        %s190 = smul.addr %s189, 8
        %s191 = scalar_lea.vmem %s3, %s190
        %p192 = pneg %p134
        %p193 = pneg %p131
        %s194 = sand.u32 %s121, 1
        %s195 = scalar_lea.sflag [#allocation3], %s194
        %s196 = sand.u32 %s121, 1
        %s197 = smul.addr %s196, 2
        %s198 = scalar_lea.vmem [#allocation2], %s197
        %p199 = scmp.lt.s32.totalorder %s19, 1
        %s200 = scalar_select %p199, %s19, 1
        %s201 = smul.addr %s200, 4
        %s202 = smul.addr %s201, 8
        %s203 = scalar_lea.vmem %s0, %s202
        %p204 = scmp.lt.s32.totalorder %s19, 1
        %s205 = scalar_select %p204, %s19, 1
        %s206 = smul.addr %s205, 8
        %s207 = smul.addr %s206, 8
        %s208 = scalar_lea.vmem %s3, %s207
        %v210 = vld [vmem:[%s203] sm:$0xff]
        %v211 = vld [vmem:[%s203 + $0x8] sm:$0xff]
        %v212 = vld [vmem:[%s203 + $0x10] sm:$0xff]
        %v213 = vld [vmem:[%s203 + $0x18] sm:$0x1]
        %vm217 = vcmask 1046528
        %v218 = vrot.slane %v210, 1
        %v219 = vrot.slane %v211, 1
        %v220 = vsel %vm217, %v218, %v219
        %v221 = vrot.slane %v212, 1
        %v222 = vsel %vm217, %v219, %v221
        %223 = vrot.lane.b32.xlu0 %v220, 7
        %v224 = vpop.permute.xlu0 %223
        %225 = vrot.lane.b32.xlu0 %v222, 7
        %v226 = vpop.permute.xlu0 %225
        %vm229 = vcmask 1045504
        %v230 = vrot.slane %v210, 2
        %v231 = vrot.slane %v211, 2
        %v232 = vsel %vm229, %v230, %v231
        %v233 = vrot.slane %v212, 2
        %v234 = vsel %vm229, %v231, %v233
        %235 = vrot.lane.b32.xlu0 %v232, 14
        %v236 = vpop.permute.xlu0 %235
        %237 = vrot.lane.b32.xlu0 %v234, 14
        %v238 = vpop.permute.xlu0 %237
        %vm241 = vcmask 1044480
        %v242 = vrot.slane %v210, 3
        %v243 = vrot.slane %v211, 3
        %v244 = vsel %vm241, %v242, %v243
        %v245 = vrot.slane %v212, 3
        %v246 = vsel %vm241, %v243, %v245
        %247 = vrot.lane.b32.xlu0 %v244, 21
        %v248 = vpop.permute.xlu0 %247
        %249 = vrot.lane.b32.xlu0 %v246, 21
        %v250 = vpop.permute.xlu0 %249
        %vm253 = vcmask 1043456
        %v254 = vrot.slane %v210, 4
        %v255 = vrot.slane %v211, 4
        %v256 = vsel %vm253, %v254, %v255
        %v257 = vrot.slane %v212, 4
        %v258 = vsel %vm253, %v255, %v257
        %259 = vrot.lane.b32.xlu0 %v256, 28
        %v260 = vpop.permute.xlu0 %259
        %261 = vrot.lane.b32.xlu0 %v258, 28
        %v262 = vpop.permute.xlu0 %261
        %vm265 = vcmask 1042432
        %v266 = vrot.slane %v210, 5
        %v267 = vrot.slane %v211, 5
        %v268 = vsel %vm265, %v266, %v267
        %v269 = vrot.slane %v212, 5
        %v270 = vsel %vm265, %v267, %v269
        %271 = vrot.lane.b32.xlu0 %v268, 35
        %v272 = vpop.permute.xlu0 %271
        %273 = vrot.lane.b32.xlu0 %v270, 35
        %v274 = vpop.permute.xlu0 %273
        %vm277 = vcmask 1041408
        %v278 = vrot.slane %v210, 6
        %v279 = vrot.slane %v211, 6
        %v280 = vsel %vm277, %v278, %v279
        %v281 = vrot.slane %v212, 6
        %v282 = vsel %vm277, %v279, %v281
        %283 = vrot.lane.b32.xlu0 %v280, 42
        %v284 = vpop.permute.xlu0 %283
        %285 = vrot.lane.b32.xlu0 %v282, 42
        %v286 = vpop.permute.xlu0 %285
        %vm289 = vcmask 1040384
        %v290 = vrot.slane %v210, 7
        %v291 = vrot.slane %v211, 7
        %v292 = vsel %vm289, %v290, %v291
        %v293 = vrot.slane %v212, 7
        %v294 = vsel %vm289, %v291, %v293
        %295 = vrot.lane.b32.xlu0 %v292, 49
        %v296 = vpop.permute.xlu0 %295
        %297 = vrot.lane.b32.xlu0 %v294, 49
        %v298 = vpop.permute.xlu0 %297
        %301 = vrot.lane.b32.xlu0 %v211, 56
        %v302 = vpop.permute.xlu0 %301
        %303 = vrot.lane.b32.xlu0 %v212, 56
        %v304 = vpop.permute.xlu0 %303
        %v308 = vrot.slane %v213, 1
        %v309 = vsel %vm217, %v221, %v308
        %310 = vrot.lane.b32.xlu0 %v222, 63
        %v311 = vpop.permute.xlu0 %310
        %312 = vrot.lane.b32.xlu0 %v309, 63
        %v313 = vpop.permute.xlu0 %312
        %vm316 = vcmask 56320
        %v317 = vsel %vm316, %v210, %v224
        %v318 = vsel %vm316, %v211, %v226
        %vm319 = vcmask 113664
        %v320 = vsel %vm319, %v317, %v236
        %v321 = vsel %vm319, %v318, %v238
        %vm322 = vcmask 171008
        %v323 = vsel %vm322, %v320, %v248
        %v324 = vsel %vm322, %v321, %v250
        %vm325 = vcmask 228352
        %v326 = vsel %vm325, %v323, %v260
        %v327 = vsel %vm325, %v324, %v262
        %vm328 = vcmask 285696
        %v329 = vsel %vm328, %v326, %v272
        %v330 = vsel %vm328, %v327, %v274
        %vm331 = vcmask 343040
        %v332 = vsel %vm331, %v329, %v284
        %v333 = vsel %vm331, %v330, %v286
        %vm334 = vcmask 400384
        %v335 = vsel %vm334, %v332, %v296
        %v336 = vsel %vm334, %v333, %v298
        %vm337 = vcmask 457728
        %v338 = vsel %vm337, %v335, %v302
        %v339 = vsel %vm337, %v336, %v304
        %vm340 = vcmask 515072
        %v341 = vsel %vm340, %v338, %v311
        %v342 = vsel %vm340, %v339, %v313
        %v343 = vpack.c.bf16 %v342, %v341
        %v344 = vld [vmem:[%s1] sm:$0xf]
        %v345 = vld [vmem:[%s1 + $0x4] sm:$0xf]
        %v346 = vld [vmem:[%s1 + $0x8] sm:$0xf]
        %v347 = vld [vmem:[%s1 + $0xc] sm:$0xf]
        %v348 = vld [vmem:[%s1 + $0x10] sm:$0xf]
        %v349 = vld [vmem:[%s1 + $0x14] sm:$0xf]
        %v350 = vld [vmem:[%s1 + $0x18] sm:$0xf]
        %v351 = vld [vmem:[%s1 + $0x1c] sm:$0xf]
        %v352 = vld [vmem:[%s1 + $0x20] sm:$0x7]
        %v353 = vld [vmem:[%s2] sm:$0x1]
        %v355 = vperm.slane %v353, 0
        %v366 = vunpack.c.l.b16 %v344
        %v367 = vunpack.c.l.b16 %v345
        %v368 = vunpack.c.l.b16 %v346
        %v369 = vunpack.c.l.b16 %v347
        %v370 = vunpack.c.l.b16 %v348
        %v371 = vunpack.c.l.b16 %v349
        %v372 = vunpack.c.l.b16 %v350
        %v373 = vunpack.c.l.b16 %v351
        %v374 = vunpack.c.l.b16 %v352
        %v375 = vpack.c.b16 %v367, %v366
        %v376 = vpack.c.b16 %v369, %v368
        %v377 = vpack.c.b16 %v371, %v370
        %v378 = vpack.c.b16 %v373, %v372
        %v379 = vpack.c.b16 %v374, %v374
        %vm384 = vcmask 572416
        %v386 = vsel %vm384, %v343, 0
        %v389 = vsel %vm265, %v379, 0
        %391 = vmatpush.bf16.msra.mxu0 0
        %392 = vmatpush.bf16.msra.mxu0 0
        %393 = vmatpush.bf16.msra.mxu0 0
        %394 = vmatpush.bf16.msra.mxu0 %v389
        %395 = vmatpush.bf16.msra.mxu0 %v378
        %396 = vmatpush.bf16.msra.mxu0 %v377
        %397 = vmatpush.bf16.msra.mxu0 %v376
        %398 = vmatpush.bf16.msra.mxu0 %v375
        %399 = vmatmul.bf16.gmra.mxu0 %v386
        %v400 = vpop.f32.mrf.mxu0
        %v401 = vadd.f32 %v355, %v400
        %v402 = vpop.f32.mrf.mxu0
        %v403 = vadd.f32 %v355, %v402
        %404 = vdwg.mxu0
        %vm405 = vcmask 523264
        %v406 = vsel %vm405, %v401, 0.0
        %vm407 = vcmask 517120
        %v408 = vsel %vm407, %v403, 0.0
        %v409 = vadd.f32 %v406, %v408
        %v410 = vrot.slane %v409, 4
        %v411 = vadd.f32 %v409, %v410
        %v412 = vrot.slane %v411, 2
        %v413 = vadd.f32 %v411, %v412
        %v414 = vrot.slane %v413, 1
        %v415 = vadd.f32 %v413, %v414
        %v416 = vmul.f32 %v401, %v401
        %v417 = vmul.f32 %v403, %v403
        %v418 = vsel %vm405, %v416, 0.0
        %v419 = vsel %vm407, %v417, 0.0
        %v420 = vadd.f32 %v418, %v419
        %v421 = vrot.slane %v420, 4
        %v422 = vadd.f32 %v420, %v421
        %v423 = vrot.slane %v422, 2
        %v424 = vadd.f32 %v422, %v423
        %v425 = vrot.slane %v424, 1
        %v426 = vadd.f32 %v424, %v425
        %v427 = vsel %vm289, %v415, %v426
        %428 = vst.msk [vmem:[%s198] sm:$0x3] %vm407, %v427
        %429 = vxpose.xlu0.b32.start [1/16] %v401, 128
        %430 = vxpose.xlu0.b32.cont [2/16] %v403, 128
        %431 = vxpose.xlu0.b32.cont [3/16] 0.0, 128
        %432 = vxpose.xlu0.b32.cont [4/16] 0.0, 128
        %433 = vxpose.xlu0.b32.cont [5/16] 0.0, 128
        %434 = vxpose.xlu0.b32.cont [6/16] 0.0, 128
        %435 = vxpose.xlu0.b32.cont [7/16] 0.0, 128
        %436 = vxpose.xlu0.b32.cont [8/16] 0.0, 128
        %437 = vxpose.xlu0.b32.cont [9/16] 0.0, 128
        %438 = vxpose.xlu0.b32.cont [10/16] 0.0, 128
        %439 = vxpose.xlu0.b32.cont [11/16] 0.0, 128
        %440 = vxpose.xlu0.b32.cont [12/16] 0.0, 128
        %441 = vxpose.xlu0.b32.cont [13/16] 0.0, 128
        %442 = vxpose.xlu0.b32.cont [14/16] 0.0, 128
        %443 = vxpose.xlu0.b32.cont [15/16] 0.0, 128
        %444 = vxpose.xlu0.b32.end [16/16] 0.0, 128
        %v445 = vpop.trf.xlu0
        %v446 = vpop.trf.xlu0
        %v447 = vpop.trf.xlu0
        %v448 = vpop.trf.xlu0
        %v449 = vpop.trf.xlu0
        %v450 = vpop.trf.xlu0
        %v451 = vpop.trf.xlu0
        %v452 = vpop.trf.xlu0
        %v453 = vpop.trf.xlu0
        %v454 = vpop.trf.xlu0
        %v455 = vpop.trf.xlu0
        %v456 = vpop.trf.xlu0
        %v457 = vpop.trf.xlu0
        %v458 = vpop.trf.xlu0
        %v459 = vpop.trf.xlu0
        %v460 = vpop.trf.xlu0
        %vm461 = vcmask 130048
        %462 = vst.msk [vmem:[%s208] sm:$0xff] %vm461, %v445
        %463 = vst.msk [vmem:[%s208 + $0x8] sm:$0xff] %vm461, %v446
        %464 = vst.msk [vmem:[%s208 + $0x10] sm:$0xff] %vm461, %v447
        %465 = vst.msk [vmem:[%s208 + $0x18] sm:$0xff] %vm461, %v448
        %466 = vst.msk [vmem:[%s208 + $0x20] sm:$0xff] %vm461, %v449
        %467 = vst.msk [vmem:[%s208 + $0x28] sm:$0xff] %vm461, %v450
        %468 = vst.msk [vmem:[%s208 + $0x30] sm:$0xff] %vm461, %v451
        %469 = vst.msk [vmem:[%s208 + $0x38] sm:$0xff] %vm461, %v452
        %p470 = scmp.lt.s32.totalorder %s19, 1
        %s471 = scalar_select %p470, %s19, 1
        %s472 = smul.addr %s471, 8
        %s473 = smul.addr %s472, 8
        %s474 = scalar_lea.vmem %s3, %s473
        %s475 = sand.u32 %s121, 1
        %s476 = scalar_lea.sflag [#allocation3], %s475
        %s477 = sand.u32 %s121, 1
        %s478 = smul.addr %s477, 2
        %s479 = scalar_lea.vmem [#allocation2], %s478
        // Predicated region
        $region33: #{tpu_custom_call.1} parent=31 // pred_check
          %p480 = pneg %p105
        $region34: #{tpu_custom_call.1} parent=31 // pred_check_branch
          %482 = sbr.rel (%p480) target = $region36
        $region35: #{tpu_custom_call.1} parent=31 // pred_region
          _
        $region36: #{tpu_custom_call.1} parent=31 // pred_fallthru
          _
        // Predicated region
        $region37: #{tpu_custom_call.1} parent=31 // pred_check
          %p483 = pneg %p131
        $region38: #{tpu_custom_call.1} parent=31 // pred_check_branch
          %485 = sbr.rel (%p483) target = $region40
        $region39: #{tpu_custom_call.1} parent=31 // pred_region
          %487 = vsyncadd %s476, 0
          %s488 = smul.addr %s19, 2
          %s489 = scalar_lea.hbm %s4, %s488
          %s491 = sshll.u32 %s479, 4
          %s492 = int_to_ptr.vmem [resolvable:$true] %s491
          %s493 = sshll.u32 %s489, 4
          %s494 = int_to_ptr.hbm [resolvable:$true] %s493
          %496 = dma.vmem_to_hbm [thread:$0]  %s492, 32, %s494, %s476
        $region40: #{tpu_custom_call.1} parent=31 // pred_fallthru
          _
      $region32: #{tpu_custom_call.1} parent=5 // pred_fallthru
        _
      %p497 = scmp.le.s32.totalorder 2, %s14
      // Predicated region
      $region41: #{tpu_custom_call.1} parent=5 // pred_check
        %p498 = pneg %p497
      $region42: #{tpu_custom_call.1} parent=5 // pred_check_branch
        %500 = sbr.rel (%p498) target = $region44
      $region43: #{tpu_custom_call.1} parent=5 // pred_region
        %s501 = ssub.s32 %s14, 2
        // Predicated region
        $region45: #{tpu_custom_call.1} parent=43 // pred_check
          %p502 = pneg %p111
        $region46: #{tpu_custom_call.1} parent=43 // pred_check_branch
          %504 = sbr.rel (%p502) target = $region48
        $region47: #{tpu_custom_call.1} parent=43 // pred_region
          %p505 = scmp.lt.s32.totalorder %s20, 1
          %s506 = scalar_select %p505, %s20, 1
          %s507 = smul.addr %s506, 8
          %s508 = smul.addr %s507, 8
          %s509 = scalar_lea.vmem %s3, %s508
        $region48: #{tpu_custom_call.1} parent=43 // pred_fallthru
          _
        // Predicated region
        $region49: #{tpu_custom_call.1} parent=43 // pred_check
          %p510 = pneg %p137
        $region50: #{tpu_custom_call.1} parent=43 // pred_check_branch
          %512 = sbr.rel (%p510) target = $region52
        $region51: #{tpu_custom_call.1} parent=43 // pred_region
          %s513 = sand.u32 %s122, 1
          %s514 = scalar_lea.sflag [#allocation3], %s513
          %s515 = sand.u32 %s122, 1
          %s516 = smul.addr %s515, 2
          %s517 = scalar_lea.vmem [#allocation2], %s516
          %519 = dma.done %s514, 32
        $region52: #{tpu_custom_call.1} parent=43 // pred_fallthru
          _
      $region44: #{tpu_custom_call.1} parent=5 // pred_fallthru
        _
    $region6: #{tpu_custom_call.1} parent=1 // loop_footer
      %s18 = sadd.s32 1, %s14
    $region7: #{tpu_custom_call.1} parent=1 // loop_footer_branch
      %13 = sbr.rel target = $region3
    $region8: #{tpu_custom_call.1} parent=1 // loop_exit
      _
    %520 = vsyncpa [#allocation3], 1
    %s521 = scalar_lea.sflag [#allocation3], 1
    %522 = vsyncpa %s521, 1

</llo_original>
